<compile_context>
chip_gen: v5e
topology: v5e:2x2
jax: 0.10.0
libtpu: 0.0.40
codegen_flags: <defaults>
</compile_context>

<pallas_src>
import jax
import jax.numpy as jnp
from jax import lax
from jax.experimental import pallas as pl
from jax.experimental.pallas import tpu as pltpu


_LANES = 128
_MAX_BLOCK_ROWS = 2048                    # (2048,128) f32 = 1 MiB per pipeline buffer
_PIPELINE_VMEM_BUDGET = 24 * 1024 * 1024  # double-buffered streamed inputs
_VMEM_LIMIT_CAP = 48 * 1024 * 1024        # stay well inside v7x's 64 MiB physical VMEM


def _cdiv(a, b):
    return -(-a // b)


def _round_up(x, m):
    return _cdiv(x, m) * m


def _num_tensorcores():
    """TensorCores addressable by one Pallas kernel (1 on v5e/v6e, 2 on v4/v5p/v7x)."""
    try:
        dev = jax.devices()[0]
        if dev.platform != "tpu":
            return 1
        kind = (getattr(dev, "device_kind", "") or "").lower().replace(" ", "")
        # TODO(synk): on v7x verify in a profile that the leading "parallel" axis
        # really shards across both TCs; otherwise switch to CORE_PARALLEL / core_map.
        if "v4" in kind or "v5p" in kind or "7" in kind:
            return 2
    except Exception:
        pass
    return 1


def _row_granule(*dtypes):
    """Sublane-row granularity so blocks stay tile-aligned for packed dtypes."""
    g = 8
    for d in dtypes:
        g = max(g, 8 * max(1, 4 // jnp.dtype(d).itemsize))
    return g


def _block_rows_for(rows, granule, cap):
    cap_g = max(granule, (cap // granule) * granule)
    return min((rows // granule) * granule, cap_g)


def _multi_scale_mse_pallas(predictions, targets, scale_weights, *,
                            max_block_rows=_MAX_BLOCK_ROWS, num_parallel=None):
    """sum_s  w_s * mean((pred_s - tgt_s)^2)  over scales with w_s > 0, fused."""
    active = [(p, t, float(w)) for p, t, w in zip(predictions, targets, scale_weights)
              if w > 0]
    if not active:
        # PyTorch's sum([]) would be the int 0; return a proper f32 scalar.
        return jnp.float32(0.0)

    if num_parallel is None:
        num_parallel = _num_tensorcores()

    big = []      # large scales: streamed straight from HBM (no host concat)
    small = []    # tiny scales / sub-vreg arrays: packed into a resident side slab
    total_elems = 0
    for p, t, w in active:
        assert p.shape == t.shape, (p.shape, t.shape)
        numel = int(p.size)
        if numel == 0:
            continue
        total_elems += numel
        rows = _cdiv(numel, _LANES)
        granule = _row_granule(p.dtype, t.dtype)
        w_pe = w / numel                       # folds the MSE mean + scale weight
        p_flat = jnp.reshape(p, (-1,))
        t_flat = jnp.reshape(t, (-1,))
        if rows >= granule:
            pad = rows * _LANES - numel
            if pad:
                # TODO(synk): a large scale whose numel is not a multiple of 128 costs
                # one extra pad copy here; typical conv pyramids stay zero-copy.
                p_flat = jnp.pad(p_flat, (0, pad))
                t_flat = jnp.pad(t_flat, (0, pad))
            big.append(dict(pred=jnp.reshape(p_flat, (rows, _LANES)),
                            tgt=jnp.reshape(t_flat, (rows, _LANES)),
                            rows=rows, granule=granule, weight=w_pe))
        else:
            pad = rows * _LANES - numel
            small.append((jnp.pad(p_flat.astype(jnp.float32), (0, pad)),
                          jnp.pad(t_flat.astype(jnp.float32), (0, pad)),
                          w_pe, rows))

    # Pick per-scale block heights under a shared VMEM budget (two pipeline
    # buffers stay allocated per streamed input even while another scale runs).
    def _pipeline_bytes(cap_):
        total = 0
        for s in big:
            br = _block_rows_for(s["rows"], s["granule"], cap_)
            itm = s["pred"].dtype.itemsize + s["tgt"].dtype.itemsize
            total += 2 * br * _LANES * itm
        return total

    cap = max(8, int(max_block_rows))
    while cap > 8 and _pipeline_bytes(cap) > _PIPELINE_VMEM_BUDGET:
        cap = max(8, cap // 2)

    n_chunks = 0
    for s in big:
        br = _block_rows_for(s["rows"], s["granule"], cap)
        s["block_rows"] = br
        s["nblk"] = _cdiv(s["rows"], br)
        s["start"] = n_chunks
        n_chunks += s["nblk"]

    # Side slab for tiny scales (zero padding contributes exactly 0).
    if small:
        rows_small = sum(r for *_, r in small)
        side_rows = _round_up(max(rows_small, 8), 8)
        side_p = jnp.concatenate([x[0] for x in small])
        side_t = jnp.concatenate([x[1] for x in small])
        side_w = jnp.concatenate(
            [jnp.full((x[3],), x[2], dtype=jnp.float32) for x in small])
        pad_e = side_rows * _LANES - side_p.shape[0]
        side_p = jnp.pad(side_p, (0, pad_e)).reshape(side_rows, _LANES)
        side_t = jnp.pad(side_t, (0, pad_e)).reshape(side_rows, _LANES)
        side_w = jnp.pad(side_w, (0, side_rows - side_w.shape[0])).reshape(side_rows, 1)
    else:
        side_rows = 8
        side_p = jnp.zeros((side_rows, _LANES), jnp.float32)
        side_t = jnp.zeros((side_rows, _LANES), jnp.float32)
        side_w = jnp.zeros((side_rows, 1), jnp.float32)

    n_t = max(1, _cdiv(n_chunks, num_parallel))
    n_big = len(big)
    big_meta = [(s["start"], s["nblk"], s["block_rows"], s["rows"], s["weight"])
                for s in big]

    def kernel(*refs):
        side_p_ref = refs[2 * n_big + 0]
        side_t_ref = refs[2 * n_big + 1]
        side_w_ref = refs[2 * n_big + 2]
        out_ref = refs[2 * n_big + 3]
        acc_ref = refs[2 * n_big + 4]

        p_idx = pl.program_id(0)
        t_idx = pl.program_id(1)
        g = p_idx * n_t + t_idx                       # global chunk id

        @pl.when(t_idx == 0)
        def _():
            acc_ref[...] = jnp.zeros_like(acc_ref)

        # Tiny scales / leftovers: resident side slab, handled once by slice 0.
        @pl.when((p_idx == 0) & (t_idx == 0))
        def _():
            d = side_p_ref[...] - side_t_ref[...]
            wdd = (d * d) * side_w_ref[...]
            acc_ref[...] += wdd.reshape(side_rows // 8, 8, _LANES).sum(axis=0)

        # Streamed scales: each owns a contiguous range of global chunk ids, so
        # its weight is a compile-time constant and every block is DMA'd once.
        for s in range(n_big):
            start_s, nblk_s, br_s, rows_s, w_s = big_meta[s]
            p_ref = refs[2 * s]
            t_ref = refs[2 * s + 1]

            @pl.when((g >= start_s) & (g < start_s + nblk_s))
            def _(p_ref=p_ref, t_ref=t_ref, start_s=start_s, br_s=br_s,
                  rows_s=rows_s, w_s=w_s):
                d = p_ref[...].astype(jnp.float32) - t_ref[...].astype(jnp.float32)
                dd = (d * d) * w_s
                if rows_s % br_s:
                    # Last block of this scale reads past the array; mask stale rows.
                    valid = rows_s - (g - start_s) * br_s
                    row_id = lax.broadcasted_iota(jnp.int32, (br_s, _LANES), 0)
                    dd = jnp.where(row_id < valid, dd, 0.0)
                # (br,128) -> (br//8, 8, 128) is tile-aligned; the leading-axis sum
                # is pure VPU vreg adds into the single-vreg accumulator.
                acc_ref[...] += dd.reshape(br_s // 8, 8, _LANES).sum(axis=0)

        @pl.when(t_idx == n_t - 1)
        def _():
            out_ref[...] = acc_ref[...]

    def _make_idx(start_s, nblk_s):
        def idx(p, t):
            g = p * n_t + t
            # Clamp so this input's block index only advances while its scale is
            # active; Pallas skips the DMA when the index repeats.
            return (jnp.minimum(jnp.maximum(g - start_s, 0), nblk_s - 1), 0)
        return idx

    inputs, in_specs = [], []
    for s in big:
        spec = pl.BlockSpec((s["block_rows"], _LANES),
                            _make_idx(s["start"], s["nblk"]))
        inputs += [s["pred"], s["tgt"]]
        in_specs += [spec, spec]
    inputs += [side_p, side_t, side_w]
    in_specs += [pl.BlockSpec((side_rows, _LANES), lambda p, t: (0, 0)),
                 pl.BlockSpec((side_rows, _LANES), lambda p, t: (0, 0)),
                 pl.BlockSpec((side_rows, 1), lambda p, t: (0, 0))]

    resident_bytes = 2 * (int(side_p.nbytes) + int(side_t.nbytes) + int(side_w.nbytes))
    vmem_limit = int(min(_VMEM_LIMIT_CAP,
                         max(16 * 1024 * 1024,
                             _pipeline_bytes(cap) + resident_bytes + (4 << 20))))
    bytes_accessed = sum(int(x.nbytes) for x in inputs) + num_parallel * 8 * _LANES * 4

    out = pl.pallas_call(
        kernel,
        out_shape=jax.ShapeDtypeStruct((num_parallel * 8, _LANES), jnp.float32),
        grid_spec=pltpu.PrefetchScalarGridSpec(
            num_scalar_prefetch=0,
            grid=(num_parallel, n_t),
            in_specs=in_specs,
            out_specs=pl.BlockSpec((8, _LANES), lambda p, t: (p, 0)),
            scratch_shapes=[pltpu.VMEM((8, _LANES), jnp.float32)],
        ),
        compiler_params=pltpu.CompilerParams(
            dimension_semantics=("parallel", "arbitrary"),
            vmem_limit_bytes=vmem_limit,
        ),
        cost_estimate=pl.CostEstimate(
            flops=4 * total_elems, transcendentals=0, bytes_accessed=bytes_accessed),
    )(*inputs)

    # Each parallel slice leaves its (8,128) f32 partial accumulator in `out`.
    return jnp.sum(out)


class MultiScaleLoss:
    """JAX/Pallas port of neurofire.criteria.multi_scale_loss.MultiScaleLoss.

    The wrapped loss defaults to MSE with mean reduction; that path runs as a
    single fused Pallas kernel over all scales.  A user-supplied `loss_fn`
    falls back to a plain per-scale JAX loop.
    """

    def __init__(self, loss_fn=None, n_scales=4, scale_weights=None,
                 fill_missing_targets=False):
        # TODO(synk): a generic wrapped nn.Module loss is not kernelized; only
        # the default MSE path goes through the fused Pallas kernel.
        self.loss_fn = loss_fn
        self.n_scales = n_scales
        if scale_weights is None:
            self.scale_weights = [1.0 / 4 ** scale for scale in range(n_scales)]
        else:
            assert isinstance(scale_weights, (list, tuple))
            assert len(scale_weights) == n_scales
            self.scale_weights = list(scale_weights)
        self.fill_missing_targets = fill_missing_targets

    def __call__(self, predictions, targets):
        assert isinstance(predictions, (list, tuple)), type(predictions)
        assert len(predictions) == self.n_scales, \
            '%i, %i' % (len(predictions), self.n_scales)
        same_len = len(predictions) == len(targets)
        if not same_len:
            assert self.fill_missing_targets and len(predictions) > len(targets), \
                '%i, %i' % (len(predictions), len(targets))
            n_missing = len(predictions) - len(targets)
            targets = n_missing * [targets[0]] + list(targets)

        if self.loss_fn is None:
            return _multi_scale_mse_pallas(predictions, targets, self.scale_weights)

        loss = jnp.float32(0.0)
        for ps, ts, ws in zip(predictions, targets, self.scale_weights):
            if ws > 0:
                loss = loss + jnp.float32(ws) * self.loss_fn(ps, ts)
        return loss


def _reference_multi_scale_mse(predictions, targets, scale_weights):
    """Pure-JAX reference for correctness checking."""
    total = jnp.float32(0.0)
    for p, t, w in zip(predictions, targets, scale_weights):
        if w > 0:
            d = p.astype(jnp.float32) - t.astype(jnp.float32)
            total = total + jnp.float32(w) * jnp.mean(d * d)
    return total


if __name__ == "__main__":
    key = jax.random.PRNGKey(0)
    n_scales = 4
    batch, channels, spatial = 2, 4, 16

    # Test 1: default pyramid (matches the module's typical usage).
    predictions, targets = [], []
    for s in range(n_scales):
        hw = spatial // (2 ** s)  # 16, 8, 4, 2
        key, kp, kt = jax.random.split(key, 3)
        predictions.append(
            jax.random.normal(kp, (batch, channels, hw, hw), dtype=jnp.float32))
        targets.append(
            jax.random.normal(kt, (batch, channels, hw, hw), dtype=jnp.float32))

    criterion = MultiScaleLoss(n_scales=n_scales)
    loss = jax.block_until_ready(criterion(predictions, targets))
    ref = jax.block_until_ready(
        _reference_multi_scale_mse(predictions, targets, criterion.scale_weights))
    assert jnp.allclose(loss, ref, rtol=1e-4, atol=1e-5), (loss, ref)

    # Test 2: exercises multi-chunk streaming, partial-block masking, mixed
    # dtypes (bf16 scale) and the ws > 0 filter, with a small block cap.
    preds2, tgts2 = [], []
    shapes2 = [(2, 4, 24, 24), (2, 4, 12, 12), (2, 4, 6, 6), (2, 4, 3, 3)]
    dtypes2 = [jnp.bfloat16, jnp.float32, jnp.float32, jnp.float32]
    for shp, dt in zip(shapes2, dtypes2):
        key, kp, kt = jax.random.split(key, 3)
        preds2.append(jax.random.normal(kp, shp, dtype=jnp.float32).astype(dt))
        tgts2.append(jax.random.normal(kt, shp, dtype=jnp.float32).astype(dt))
    weights2 = [1.0, 0.5, 0.25, 0.0]
    loss2 = jax.block_until_ready(
        _multi_scale_mse_pallas(preds2, tgts2, weights2, max_block_rows=16))
    ref2 = jax.block_until_ready(
        _reference_multi_scale_mse(preds2, tgts2, weights2))
    assert jnp.allclose(loss2, ref2, rtol=1e-4, atol=1e-5), (loss2, ref2)

    print("KERNEL_OK")
</pallas_src>

<mosaic_0001>
module attributes {stable_mosaic.version = 11 : i64} {
  func.func @kernel(%arg0: i32, %arg1: i32, %arg2: memref<16x128xf32, #tpu.memory_space<vmem>>, %arg3: memref<16x128xf32, #tpu.memory_space<vmem>>, %arg4: memref<8x128xf32, #tpu.memory_space<vmem>>, %arg5: memref<8x128xf32, #tpu.memory_space<vmem>>, %arg6: memref<8x1xf32, #tpu.memory_space<vmem>>, %arg7: memref<8x128xf32, #tpu.memory_space<vmem>>, %arg8: memref<8x128xf32, #tpu.memory_space<vmem>>) attributes {dimension_semantics = [#tpu.dimension_semantics<parallel>, #tpu.dimension_semantics<arbitrary>], iteration_bounds = array<i64: 1, 1>, scalar_prefetch = 0 : i64, scratch_operands = 1 : i64, tpu.core_type = #tpu.core_type<tc>, window_params = [{transform_indices = @transform_0, window_bounds = array<i64: 16, 128>}, {transform_indices = @transform_1, window_bounds = array<i64: 16, 128>}, {pipeline_mode = #tpu.pipeline_mode<synchronous>, transform_indices = @transform_2, window_bounds = array<i64: 8, 128>}, {pipeline_mode = #tpu.pipeline_mode<synchronous>, transform_indices = @transform_3, window_bounds = array<i64: 8, 128>}, {pipeline_mode = #tpu.pipeline_mode<synchronous>, transform_indices = @transform_4, window_bounds = array<i64: 8, 1>}, {transform_indices = @transform_5, window_bounds = array<i64: 8, 128>}]} {
    %c1_i32 = arith.constant 1 : i32
    %0 = arith.muli %arg0, %c1_i32 : i32
    %1 = arith.addi %0, %arg1 : i32
    %c0_i32 = arith.constant 0 : i32
    %2 = arith.cmpi eq, %arg1, %c0_i32 : i32
    %3 = arith.extui %2 : i1 to i32
    %c0_i32_0 = arith.constant 0 : i32
    %4 = arith.cmpi ne, %3, %c0_i32_0 : i32
    scf.if %4 {
      %cst = arith.constant 0.000000e+00 : f32
      %18 = vector.broadcast %cst : f32 to vector<8x128xf32>
      %c0 = arith.constant 0 : index
      %c0_9 = arith.constant 0 : index
      %19 = vector.load %arg8[%c0, %c0_9] : memref<8x128xf32, #tpu.memory_space<vmem>>, vector<8x128xf32>
      tpu.vector_store %arg8[%c0, %c0_9], %18 {strides = array<i32>} : memref<8x128xf32, #tpu.memory_space<vmem>>, vector<8x128xf32>,
    } else {
    }
    %c0_i32_1 = arith.constant 0 : i32
    %5 = arith.cmpi eq, %arg0, %c0_i32_1 : i32
    %c0_i32_2 = arith.constant 0 : i32
    %6 = arith.cmpi eq, %arg1, %c0_i32_2 : i32
    %7 = arith.andi %5, %6 : i1
    %8 = arith.extui %7 : i1 to i32
    %c0_i32_3 = arith.constant 0 : i32
    %9 = arith.cmpi ne, %8, %c0_i32_3 : i32
    scf.if %9 {
      %c0 = arith.constant 0 : index
      %c0_9 = arith.constant 0 : index
      %18 = vector.load %arg4[%c0, %c0_9] : memref<8x128xf32, #tpu.memory_space<vmem>>, vector<8x128xf32>
      %c0_10 = arith.constant 0 : index
      %c0_11 = arith.constant 0 : index
      %19 = vector.load %arg5[%c0_10, %c0_11] : memref<8x128xf32, #tpu.memory_space<vmem>>, vector<8x128xf32>
      %20 = arith.subf %18, %19 : vector<8x128xf32>
      %21 = arith.mulf %20, %20 : vector<8x128xf32>
      %c0_12 = arith.constant 0 : index
      %c0_13 = arith.constant 0 : index
      %22 = vector.load %arg6[%c0_12, %c0_13] : memref<8x1xf32, #tpu.memory_space<vmem>>, vector<8x1xf32>
      %23 = vector.broadcast %22 : vector<8x1xf32> to vector<8x128xf32>
      %24 = arith.mulf %21, %23 : vector<8x128xf32>
      %c0_14 = arith.constant 0 : index
      %c0_15 = arith.constant 0 : index
      %25 = vector.load %arg8[%c0_14, %c0_15] : memref<8x128xf32, #tpu.memory_space<vmem>>, vector<8x128xf32>
      %26 = vector.shape_cast %24 : vector<8x128xf32> to vector<1x8x128xf32>
      %cst = arith.constant dense<0.000000e+00> : vector<8x128xf32>
      %27 = vector.multi_reduction <add>, %26, %cst [0] : vector<1x8x128xf32> to vector<8x128xf32>
      %28 = arith.addf %25, %27 : vector<8x128xf32>
      %c0_16 = arith.constant 0 : index
      %c0_17 = arith.constant 0 : index
      %29 = vector.load %arg8[%c0_16, %c0_17] : memref<8x128xf32, #tpu.memory_space<vmem>>, vector<8x128xf32>
      tpu.vector_store %arg8[%c0_16, %c0_17], %28 {strides = array<i32>} : memref<8x128xf32, #tpu.memory_space<vmem>>, vector<8x128xf32>,
    } else {
    }
    %c0_i32_4 = arith.constant 0 : i32
    %10 = arith.cmpi sge, %1, %c0_i32_4 : i32
    %c1_i32_5 = arith.constant 1 : i32
    %11 = arith.cmpi slt, %1, %c1_i32_5 : i32
    %12 = arith.andi %10, %11 : i1
    %13 = arith.extui %12 : i1 to i32
    %c0_i32_6 = arith.constant 0 : i32
    %14 = arith.cmpi ne, %13, %c0_i32_6 : i32
    scf.if %14 {
      %c0 = arith.constant 0 : index
      %c0_9 = arith.constant 0 : index
      %18 = vector.load %arg2[%c0, %c0_9] : memref<16x128xf32, #tpu.memory_space<vmem>>, vector<16x128xf32>
      %c0_10 = arith.constant 0 : index
      %c0_11 = arith.constant 0 : index
      %19 = vector.load %arg3[%c0_10, %c0_11] : memref<16x128xf32, #tpu.memory_space<vmem>>, vector<16x128xf32>
      %20 = arith.subf %18, %19 : vector<16x128xf32>
      %21 = arith.mulf %20, %20 : vector<16x128xf32>
      %cst = arith.constant 4.8828125E-4 : f32
      %22 = vector.broadcast %cst : f32 to vector<16x128xf32>
      %23 = arith.mulf %21, %22 : vector<16x128xf32>
      %c0_12 = arith.constant 0 : index
      %c0_13 = arith.constant 0 : index
      %24 = vector.load %arg8[%c0_12, %c0_13] : memref<8x128xf32, #tpu.memory_space<vmem>>, vector<8x128xf32>
      %25 = vector.shape_cast %23 : vector<16x128xf32> to vector<2x8x128xf32>
      %cst_14 = arith.constant dense<0.000000e+00> : vector<8x128xf32>
      %26 = vector.multi_reduction <add>, %25, %cst_14 [0] : vector<2x8x128xf32> to vector<8x128xf32>
      %27 = arith.addf %24, %26 : vector<8x128xf32>
      %c0_15 = arith.constant 0 : index
      %c0_16 = arith.constant 0 : index
      %28 = vector.load %arg8[%c0_15, %c0_16] : memref<8x128xf32, #tpu.memory_space<vmem>>, vector<8x128xf32>
      tpu.vector_store %arg8[%c0_15, %c0_16], %27 {strides = array<i32>} : memref<8x128xf32, #tpu.memory_space<vmem>>, vector<8x128xf32>,
    } else {
    }
    %c0_i32_7 = arith.constant 0 : i32
    %15 = arith.cmpi eq, %arg1, %c0_i32_7 : i32
    %16 = arith.extui %15 : i1 to i32
    %c0_i32_8 = arith.constant 0 : i32
    %17 = arith.cmpi ne, %16, %c0_i32_8 : i32
    scf.if %17 {
      %c0 = arith.constant 0 : index
      %c0_9 = arith.constant 0 : index
      %18 = vector.load %arg8[%c0, %c0_9] : memref<8x128xf32, #tpu.memory_space<vmem>>, vector<8x128xf32>
      %c0_10 = arith.constant 0 : index
      %c0_11 = arith.constant 0 : index
      %19 = vector.load %arg7[%c0_10, %c0_11] : memref<8x128xf32, #tpu.memory_space<vmem>>, vector<8x128xf32>
      tpu.vector_store %arg7[%c0_10, %c0_11], %18 {strides = array<i32>} : memref<8x128xf32, #tpu.memory_space<vmem>>, vector<8x128xf32>,
    } else {
    }
    return
  }
  func.func @transform_0(%arg0: i32, %arg1: i32) -> (i32, i32) {
    %c1_i32 = arith.constant 1 : i32
    %0 = arith.muli %arg0, %c1_i32 : i32
    %1 = arith.addi %0, %arg1 : i32
    %c0_i32 = arith.constant 0 : i32
    %2 = arith.subi %1, %c0_i32 : i32
    %c0_i32_0 = arith.constant 0 : i32
    %3 = arith.maxsi %2, %c0_i32_0 : i32
    %c0_i32_1 = arith.constant 0 : i32
    %4 = arith.minsi %3, %c0_i32_1 : i32
    %c0_i32_2 = arith.constant 0 : i32
    %c0_i32_3 = arith.constant 0 : i32
    return %4, %c0_i32_2 : i32, i32
  }
  func.func @transform_1(%arg0: i32, %arg1: i32) -> (i32, i32) {
    %c1_i32 = arith.constant 1 : i32
    %0 = arith.muli %arg0, %c1_i32 : i32
    %1 = arith.addi %0, %arg1 : i32
    %c0_i32 = arith.constant 0 : i32
    %2 = arith.subi %1, %c0_i32 : i32
    %c0_i32_0 = arith.constant 0 : i32
    %3 = arith.maxsi %2, %c0_i32_0 : i32
    %c0_i32_1 = arith.constant 0 : i32
    %4 = arith.minsi %3, %c0_i32_1 : i32
    %c0_i32_2 = arith.constant 0 : i32
    %c0_i32_3 = arith.constant 0 : i32
    return %4, %c0_i32_2 : i32, i32
  }
  func.func @transform_2(%arg0: i32, %arg1: i32) -> (i32, i32) {
    %c0_i32 = arith.constant 0 : i32
    %c0_i32_0 = arith.constant 0 : i32
    %c0_i32_1 = arith.constant 0 : i32
    return %c0_i32, %c0_i32_0 : i32, i32
  }
  func.func @transform_3(%arg0: i32, %arg1: i32) -> (i32, i32) {
    %c0_i32 = arith.constant 0 : i32
    %c0_i32_0 = arith.constant 0 : i32
    %c0_i32_1 = arith.constant 0 : i32
    return %c0_i32, %c0_i32_0 : i32, i32
  }
  func.func @transform_4(%arg0: i32, %arg1: i32) -> (i32, i32) {
    %c0_i32 = arith.constant 0 : i32
    %c0_i32_0 = arith.constant 0 : i32
    %c0_i32_1 = arith.constant 0 : i32
    return %c0_i32, %c0_i32_0 : i32, i32
  }
  func.func @transform_5(%arg0: i32, %arg1: i32) -> (i32, i32) {
    %c0_i32 = arith.constant 0 : i32
    %c0_i32_0 = arith.constant 0 : i32
    return %arg0, %c0_i32 : i32, i32
  }
}

</mosaic_0001>

<llo_original>
// kernel: tpu_custom_call.1
$region0: #{tpu_custom_call.1}
  #allocation0 [shape = 'u32[]', space=smem, size = 0x4, offset = 0x4, fixed_abs, tag = 'smem constant byte address 0x4 - core index']
  #allocation1 [shape = 'u32[72,128]{1,0:T(1,128)}', space=vmem, size = 0x9000, scoped, tag = 'internal scratch']
  #allocation2 [shape = 'f32[8,128]{1,0:T(8,128)}', space=vmem, size = 0x1000, scoped, tag = 'scratch operand']
  %s0 = inlined_call_operand.hbm [shape: f32[16,128], index: 0, kind: input, shape index: {}]
  %s1 = inlined_call_operand.hbm [shape: f32[16,128], index: 1, kind: input, shape index: {}]
  %s2 = inlined_call_operand.vmem [shape: f32[8,128], index: 2, kind: input, shape index: {}]
  %s3 = inlined_call_operand.hbm [shape: f32[8,128], index: 3, kind: input, shape index: {}]
  %s4 = inlined_call_operand.vmem [shape: f32[8,1], index: 4, kind: input, shape index: {}]
  %s5 = inlined_call_operand.hbm [shape: f32[8,128], index: 5, kind: output, shape index: {}]
  %s6 = sld [smem:[#allocation0]]
  $region58: #{tpu_custom_call.1} parent=0
    _
  %s8 = ssub.s32 1, %s6
  %s9 = scalar_select 0, %s8, %s6
  $region1: #{tpu_custom_call.1} parent=0
    #allocation3 [shape = 'u8[8192]{0}', space=vmem, size = 0x2000, scoped, tag = 'input window, operand 0, single buffered']
    #allocation4 [shape = 's32[1]{0}', space=sflag, size = 0x4, scoped, tag = 'scoped memory for tpu_custom_call.1']
    #allocation5 [shape = 's32[1]{0}', space=sflag, size = 0x4, scoped, tag = 'scoped memory for tpu_custom_call.1']
    #allocation6 [shape = 'u8[8192]{0}', space=vmem, size = 0x2000, scoped, tag = 'input window, operand 1, single buffered']
    #allocation7 [shape = 's32[1]{0}', space=sflag, size = 0x4, scoped, tag = 'scoped memory for tpu_custom_call.1']
    #allocation8 [shape = 'u8[4096]{0}', space=vmem, size = 0x1000, scoped, tag = 'input window, operand 3, single buffered']
    #allocation9 [shape = 'u8[4096]{0}', space=vmem, size = 0x1000, scoped, tag = 'output window, operand 0, single buffered']
    %10 = vsyncpa [#allocation4], 0
    %11 = vsyncpa [#allocation7], 0
    %12 = vsyncpa [#allocation5], 0
    // Predicated region
    $region2: #{tpu_custom_call.1} parent=1 // pred_check
      _
    $region3: #{tpu_custom_call.1} parent=1 // pred_check_branch
      %14 = sbr.rel (0) target = $region5
    $region4: #{tpu_custom_call.1} parent=1 // pred_region
      %s15 = sadd.s32 0, 0
      %p16 = scmp.gt.s32.totalorder %s15, 0
      %s17 = scalar_select %p16, %s15, 0
      %p18 = scmp.lt.s32.totalorder %s17, 0
      %s19 = scalar_select %p18, %s17, 0
      %s20 = smul.u32 2, %s19
      %22 = vsyncadd [#allocation4], 0
      %s23 = smul.addr %s20, 8
      %s24 = scalar_lea.hbm %s0, %s23
      %s25 = sshll.u32 %s24, 4
      %s26 = int_to_ptr.hbm [resolvable:$true] %s25
      %s27 = sshll.u32 [#allocation3], 4
      %s28 = int_to_ptr.vmem [resolvable:$true] %s27
      %33 = dma.hbm_to_vmem [thread:$0]  %s26, 256, %s28, [#allocation4], 128, 128, 8
    $region5: #{tpu_custom_call.1} parent=1 // pred_fallthru
      _
    // Predicated region
    $region6: #{tpu_custom_call.1} parent=1 // pred_check
      _
    $region7: #{tpu_custom_call.1} parent=1 // pred_check_branch
      %35 = sbr.rel (0) target = $region9
    $region8: #{tpu_custom_call.1} parent=1 // pred_region
      %s36 = sadd.s32 0, 0
      %p37 = scmp.gt.s32.totalorder %s36, 0
      %s38 = scalar_select %p37, %s36, 0
      %p39 = scmp.lt.s32.totalorder %s38, 0
      %s40 = scalar_select %p39, %s38, 0
      %s41 = smul.u32 2, %s40
      %43 = vsyncadd [#allocation7], 0
      %s44 = smul.addr %s41, 8
      %s45 = scalar_lea.hbm %s1, %s44
      %s46 = sshll.u32 %s45, 4
      %s47 = int_to_ptr.hbm [resolvable:$true] %s46
      %s48 = sshll.u32 [#allocation6], 4
      %s49 = int_to_ptr.vmem [resolvable:$true] %s48
      %54 = dma.hbm_to_vmem [thread:$0]  %s47, 256, %s49, [#allocation7], 128, 128, 8
    $region9: #{tpu_custom_call.1} parent=1 // pred_fallthru
      _
    // Predicated region
    $region10: #{tpu_custom_call.1} parent=1 // pred_check
      _
    $region11: #{tpu_custom_call.1} parent=1 // pred_check_branch
      %56 = sbr.rel (0) target = $region13
    $region12: #{tpu_custom_call.1} parent=1 // pred_region
      _
    $region13: #{tpu_custom_call.1} parent=1 // pred_fallthru
      _
    // Predicated region
    $region14: #{tpu_custom_call.1} parent=1 // pred_check
      _
    $region15: #{tpu_custom_call.1} parent=1 // pred_check_branch
      %58 = sbr.rel (0) target = $region17
    $region16: #{tpu_custom_call.1} parent=1 // pred_region
      %60 = vsyncadd [#allocation7], 0
      %s62 = sshll.u32 %s3, 4
      %s63 = int_to_ptr.hbm [resolvable:$true] %s62
      %s64 = sshll.u32 [#allocation8], 4
      %s65 = int_to_ptr.vmem [resolvable:$true] %s64
      %67 = dma.hbm_to_vmem [thread:$0]  %s63, 128, %s65, [#allocation7]
    $region17: #{tpu_custom_call.1} parent=1 // pred_fallthru
      _
    // Predicated region
    $region18: #{tpu_custom_call.1} parent=1 // pred_check
      _
    $region19: #{tpu_custom_call.1} parent=1 // pred_check_branch
      %69 = sbr.rel (0) target = $region21
    $region20: #{tpu_custom_call.1} parent=1 // pred_region
      _
    $region21: #{tpu_custom_call.1} parent=1 // pred_fallthru
      _
    // Predicated region
    $region22: #{tpu_custom_call.1} parent=1 // pred_check
      _
    $region23: #{tpu_custom_call.1} parent=1 // pred_check_branch
      %71 = sbr.rel (0) target = $region25
    $region24: #{tpu_custom_call.1} parent=1 // pred_region
      %73 = dma.done [#allocation4], 256
    $region25: #{tpu_custom_call.1} parent=1 // pred_fallthru
      _
    // Predicated region
    $region26: #{tpu_custom_call.1} parent=1 // pred_check
      _
    $region27: #{tpu_custom_call.1} parent=1 // pred_check_branch
      %75 = sbr.rel (0) target = $region29
    $region28: #{tpu_custom_call.1} parent=1 // pred_region
      %77 = dma.done [#allocation7], 256
    $region29: #{tpu_custom_call.1} parent=1 // pred_fallthru
      _
    // Predicated region
    $region30: #{tpu_custom_call.1} parent=1 // pred_check
      _
    $region31: #{tpu_custom_call.1} parent=1 // pred_check_branch
      %79 = sbr.rel (0) target = $region33
    $region32: #{tpu_custom_call.1} parent=1 // pred_region
      %81 = dma.done [#allocation7], 128
    $region33: #{tpu_custom_call.1} parent=1 // pred_fallthru
      _
    %s82 = sadd.s32 0, 0
    %p83 = scmp.gt.s32.totalorder %s82, 0
    %s84 = scalar_select %p83, %s82, 0
    %p85 = scmp.lt.s32.totalorder %s84, 0
    %s86 = scalar_select %p85, %s84, 0
    %s87 = smul.u32 2, %s86
    %s88 = sadd.s32 0, 0
    %p89 = scmp.gt.s32.totalorder %s88, 0
    %s90 = scalar_select %p89, %s88, 0
    %p91 = scmp.lt.s32.totalorder %s90, 0
    %s92 = scalar_select %p91, %s90, 0
    %s93 = smul.u32 2, %s92
    %s94 = sadd.s32 0, 0
    %p95 = scmp.eq.s32.totalorder 0, 0
    // Predicated region
    $region34: #{tpu_custom_call.1} parent=1 // pred_check
      %p96 = pneg %p95
    $region35: #{tpu_custom_call.1} parent=1 // pred_check_branch
      %98 = sbr.rel (%p96) target = $region37
    $region36: #{tpu_custom_call.1} parent=1 // pred_region
      %99 = vst [vmem:[#allocation2] sm:$0xff] 0.0
    $region37: #{tpu_custom_call.1} parent=1 // pred_fallthru
      _
    %p100 = scmp.eq.s32.totalorder 0, 0
    %p101 = pnand %p100, %p95
    %p102 = pneg %p101
    // Predicated region
    $region38: #{tpu_custom_call.1} parent=1 // pred_check
      _
    $region39: #{tpu_custom_call.1} parent=1 // pred_check_branch
      %104 = sbr.rel (%p101) target = $region41
    $region40: #{tpu_custom_call.1} parent=1 // pred_region
      %v105 = vld [vmem:[%s2] sm:$0xff]
      %v106 = vld [vmem:[#allocation8] sm:$0xff]
      %v107 = vsub.f32 %v105, %v106
      %v108 = vmul.f32 %v107, %v107
      %v109 = vld [vmem:[%s4] sm:$0xff]
      %111 = vset.pattern.permute.xlu0 0
      %112 = vperm.xlu0 %111, %v109
      %v113 = vpop.permute.xlu0 %112
      %v115 = vmul.f32 %v108, %v113
      %v116 = vld [vmem:[#allocation2] sm:$0xff]
      %v117 = vadd.f32 %v115, 0.0
      %v118 = vadd.f32 %v116, %v117
      %119 = vst [vmem:[#allocation2] sm:$0xff] %v118
    $region41: #{tpu_custom_call.1} parent=1 // pred_fallthru
      _
    %p120 = scmp.ge.s32.totalorder %s94, 0
    %p121 = scmp.lt.s32.totalorder %s94, 1
    %p122 = pnand %p120, %p121
    %p123 = pneg %p122
    // Predicated region
    $region42: #{tpu_custom_call.1} parent=1 // pred_check
      _
    $region43: #{tpu_custom_call.1} parent=1 // pred_check_branch
      %125 = sbr.rel (%p122) target = $region45
    $region44: #{tpu_custom_call.1} parent=1 // pred_region
      %v126 = vld [vmem:[#allocation3] sm:$0xff]
      %v127 = vld [vmem:[#allocation3 + $0x8] sm:$0xff]
      %v128 = vld [vmem:[#allocation6] sm:$0xff]
      %v129 = vld [vmem:[#allocation6 + $0x8] sm:$0xff]
      %v130 = vsub.f32 %v126, %v128
      %v131 = vsub.f32 %v127, %v129
      %v132 = vmul.f32 %v130, %v130
      %v133 = vmul.f32 %v131, %v131
      %v134 = vmul.f32 %v132, 0.00048828125
      %v135 = vmul.f32 %v133, 0.00048828125
      %v136 = vld [vmem:[#allocation2] sm:$0xff]
      %v137 = vadd.f32 %v134, %v135
      %v138 = vadd.f32 %v136, %v137
      %139 = vst [vmem:[#allocation2] sm:$0xff] %v138
    $region45: #{tpu_custom_call.1} parent=1 // pred_fallthru
      _
    // Predicated region
    $region46: #{tpu_custom_call.1} parent=1 // pred_check
      %p140 = pneg %p95
    $region47: #{tpu_custom_call.1} parent=1 // pred_check_branch
      %142 = sbr.rel (%p140) target = $region49
    $region48: #{tpu_custom_call.1} parent=1 // pred_region
      %v143 = vld [vmem:[#allocation2] sm:$0xff]
      %144 = vst [vmem:[#allocation9] sm:$0xff] %v143
    $region49: #{tpu_custom_call.1} parent=1 // pred_fallthru
      _
    // Predicated region
    $region50: #{tpu_custom_call.1} parent=1 // pred_check
      _
    $region51: #{tpu_custom_call.1} parent=1 // pred_check_branch
      %146 = sbr.rel (0) target = $region53
    $region52: #{tpu_custom_call.1} parent=1 // pred_region
      %148 = vsyncadd [#allocation5], 0
      %s150 = sshll.u32 [#allocation9], 4
      %s151 = int_to_ptr.vmem [resolvable:$true] %s150
      %s152 = sshll.u32 %s5, 4
      %s153 = int_to_ptr.hbm [resolvable:$true] %s152
      %155 = dma.vmem_to_hbm [thread:$0]  %s151, 128, %s153, [#allocation5]
    $region53: #{tpu_custom_call.1} parent=1 // pred_fallthru
      _
    // Predicated region
    $region54: #{tpu_custom_call.1} parent=1 // pred_check
      _
    $region55: #{tpu_custom_call.1} parent=1 // pred_check_branch
      %157 = sbr.rel (0) target = $region57
    $region56: #{tpu_custom_call.1} parent=1 // pred_region
      %159 = dma.done [#allocation5], 128
    $region57: #{tpu_custom_call.1} parent=1 // pred_fallthru
      _
    %160 = vsyncpa [#allocation4], 1
    %161 = vsyncpa [#allocation7], 1
    %162 = vsyncpa [#allocation5], 1

</llo_original>
